<compile_context>
chip_gen: v7x
topology: tpu7x:2x2x1
jax: 0.10.0
libtpu: 0.0.40
codegen_flags: <defaults>
</compile_context>

<pallas_src>
import jax
import jax.numpy as jnp
from jax.experimental import pallas as pl
from jax.experimental.pallas import tpu as pltpu


def _device_kind():
    try:
        return jax.devices()[0].device_kind.lower()
    except Exception:
        return ""


def _default_num_cores():
    # Only v7x has 2 TensorCores per chip; on v5e/v6e a second "core" axis just
    # serializes, re-DMAs a duplicate clamped block and forces masking.
    kind = _device_kind()
    return 2 if ("v7" in kind or "7x" in kind) else 1


def _default_block_bytes():
    kind = _device_kind()
    if "v7" in kind or "7x" in kind:
        return 4 << 20   # ~3.2 TB/s HBM: amortize the ~0.35 us/step overhead
    if "v5" in kind:
        return 3 << 19   # 1.5 MiB: v5e default scoped VMEM is only 16 MiB
    return 2 << 20       # v6e and everything else


def spectral_convergence(predicts_mag, targets_mag, *,
                         target_block_bytes=None, num_cores=None):
    """Pallas implementation of SpectralConvergence.forward. Returns a scalar."""
    assert predicts_mag.shape == targets_mag.shape
    assert predicts_mag.dtype == targets_mag.dtype

    if target_block_bytes is None:
        target_block_bytes = _default_block_bytes()
    if num_cores is None:
        num_cores = _default_num_cores()

    total = predicts_mag.size
    if total % 128 == 0:
        # Lane-dense layout regardless of freq_bins (reshape is metadata-only).
        cols = 128
    else:
        # Common STFT case (freq_bins = n_fft/2+1); accept the lane
        # under-utilization rather than paying an extra HBM pad pass.
        cols = predicts_mag.shape[-1]
    rows = total // cols
    p2 = predicts_mag.reshape(rows, cols)
    t2 = targets_mag.reshape(rows, cols)

    itemsize = p2.dtype.itemsize
    sub = 8 if itemsize >= 4 else (16 if itemsize == 2 else 32)  # sublane pack
    row_tile = max(sub, (target_block_bytes // (cols * itemsize)) // sub * sub)
    rows_padded = ((rows + sub - 1) // sub) * sub
    row_tile = min(row_tile, rows_padded)
    groups = row_tile // 8                      # fold factor for accumulation

    n_blocks = pl.cdiv(rows, row_tile)          # total row-blocks
    n_steps = pl.cdiv(n_blocks, num_cores)      # blocks per core (grid axis 1)
    needs_mask = (rows % row_tile != 0) or (num_cores * n_steps != n_blocks)

    if num_cores == 1:
        def in_index_map(c, i):
            return (i, 0)
    else:
        def in_index_map(c, i):
            # Clamp overhang blocks of the last core; their contribution is
            # zeroed by the masked edge path (needs_mask forced True then).
            return (jnp.minimum(c * n_steps + i, n_blocks - 1), 0)

    def kernel(p_ref, t_ref, out_ref, acc_d_ref, acc_t_ref):
        c = pl.program_id(0)
        i = pl.program_id(1)

        @pl.when(i == 0)
        def _init():
            acc_d_ref[...] = jnp.zeros_like(acc_d_ref)
            acc_t_ref[...] = jnp.zeros_like(acc_t_ref)

        def accumulate(mask_rows):
            t = t_ref[...].astype(jnp.float32)
            p = p_ref[...].astype(jnp.float32)
            if mask_rows:
                start = (c * n_steps + i) * row_tile
                row_ids = start + jax.lax.broadcasted_iota(
                    jnp.int32, (row_tile, cols), 0)
                valid = row_ids < rows
                t = jnp.where(valid, t, 0.0)
                p = jnp.where(valid, p, 0.0)
            d = t - p
            # Fold the whole tile into one vreg-row of partial sums while still
            # in registers (axis-0 reduce = pure VALU add tree): accumulator
            # traffic becomes 2 loads + 2 stores per STEP instead of per data
            # vreg, keeping the vst slot clear and the finalize reduce trivial.
            dd = jnp.sum((d * d).reshape(groups, 8, cols), axis=0)
            tt = jnp.sum((t * t).reshape(groups, 8, cols), axis=0)
            acc_d_ref[...] += dd
            acc_t_ref[...] += tt

        if needs_mask:
            # Only the ragged last block and clamped overhang blocks pay the
            # iota/compare/select cost; interior blocks take the cheap path
            # (the cold pl.when branch is skipped at runtime).
            is_edge = (c * n_steps + i) >= (n_blocks - 1)

            @pl.when(jnp.logical_not(is_edge))
            def _interior():
                accumulate(False)

            @pl.when(is_edge)
            def _edge():
                accumulate(True)
        else:
            accumulate(False)

        @pl.when(i == pl.num_programs(1) - 1)
        def _finalize():
            diff_ss = jnp.sum(acc_d_ref[...])
            targ_ss = jnp.sum(acc_t_ref[...])
            lane_block = jnp.zeros((8, 128), jnp.float32)
            out_ref[0, 0] = lane_block + diff_ss
            out_ref[0, 1] = lane_block + targ_ss

    out_bytes = num_cores * 2 * 8 * 128 * 4
    cost = pl.CostEstimate(
        flops=5 * total,                                   # sub + 2 mul + 2 add
        transcendentals=0,
        bytes_accessed=2 * total * itemsize + out_bytes,
    )

    partials = pl.pallas_call(
        kernel,
        out_shape=jax.ShapeDtypeStruct((num_cores, 2, 8, 128), jnp.float32),
        grid_spec=pltpu.PrefetchScalarGridSpec(
            num_scalar_prefetch=0,
            grid=(num_cores, n_steps),
            in_specs=[
                pl.BlockSpec((row_tile, cols), in_index_map),
                pl.BlockSpec((row_tile, cols), in_index_map),
            ],
            out_specs=pl.BlockSpec((1, 2, 8, 128), lambda c, i: (c, 0, 0, 0)),
            scratch_shapes=[
                pltpu.VMEM((8, cols), jnp.float32),
                pltpu.VMEM((8, cols), jnp.float32),
            ],
        ),
        compiler_params=pltpu.CompilerParams(
            # TODO(synk): on v7x, verify via xprof that the core axis shards
            # across both TensorCores; if not, switch to pltpu.CORE_PARALLEL.
            dimension_semantics=("parallel", "arbitrary"),
        ),
        cost_estimate=cost,
    )(p2, t2)

    diff_ss = jnp.sum(partials[:, 0, 0, 0])
    targ_ss = jnp.sum(partials[:, 1, 0, 0])
    # NOTE: all-zero targets (y == 0) yield inf/NaN, matching the PyTorch ref.
    return jnp.sqrt(diff_ss) / jnp.sqrt(targ_ss)


def _reference(predicts_mag, targets_mag):
    x = jnp.linalg.norm((targets_mag - predicts_mag).reshape(-1))
    y = jnp.linalg.norm(targets_mag.reshape(-1))
    return x / y


if __name__ == "__main__":
    # SpectralConvergence has no parameters, so nothing to initialize.
    key = jax.random.PRNGKey(0)

    shapes = [
        (2, 16, 128),   # lane-dense, exactly tiled (fast unmasked path)
        (3, 5, 128),    # lane-dense, ragged last row-tile (pl.when edge mask)
        (2, 8, 65),     # freq_bins not a multiple of 128 (full-dim lane block)
    ]
    ok = True
    for shape in shapes:
        key, kp, kt = jax.random.split(key, 3)
        predicts_mag = jnp.abs(jax.random.normal(kp, shape, dtype=jnp.float32))
        targets_mag = jnp.abs(jax.random.normal(kt, shape, dtype=jnp.float32))

        loss = jax.block_until_ready(
            spectral_convergence(predicts_mag, targets_mag))
        ref = jax.block_until_ready(_reference(predicts_mag, targets_mag))
        if not jnp.allclose(loss, ref, rtol=1e-5, atol=1e-6):
            ok = False
            print(f"MISMATCH for shape {shape}: kernel={loss} ref={ref}")

    if ok:
        print("KERNEL_OK")
</pallas_src>

<mosaic_0001>
module attributes {stable_mosaic.version = 11 : i64} {
  func.func @kernel(%arg0: i32, %arg1: i32, %arg2: memref<32x128xf32, #tpu.memory_space<vmem>>, %arg3: memref<32x128xf32, #tpu.memory_space<vmem>>, %arg4: memref<1x2x8x128xf32, #tpu.memory_space<vmem>>, %arg5: memref<8x128xf32, #tpu.memory_space<vmem>>, %arg6: memref<8x128xf32, #tpu.memory_space<vmem>>) attributes {dimension_semantics = [#tpu.dimension_semantics<parallel>, #tpu.dimension_semantics<arbitrary>], iteration_bounds = array<i64: 1, 1>, scalar_prefetch = 0 : i64, scratch_operands = 2 : i64, tpu.core_type = #tpu.core_type<tc>, window_params = [{transform_indices = @transform_0, window_bounds = array<i64: 32, 128>}, {transform_indices = @transform_1, window_bounds = array<i64: 32, 128>}, {transform_indices = @transform_2, window_bounds = array<i64: 1, 2, 8, 128>}]} {
    %c0_i32 = arith.constant 0 : i32
    %0 = arith.cmpi eq, %arg1, %c0_i32 : i32
    %1 = arith.extui %0 : i1 to i32
    %c0_i32_0 = arith.constant 0 : i32
    %2 = arith.cmpi ne, %1, %c0_i32_0 : i32
    scf.if %2 {
      %cst_15 = arith.constant 0.000000e+00 : f32
      %21 = vector.broadcast %cst_15 : f32 to vector<8x128xf32>
      %c0_16 = arith.constant 0 : index
      %c0_17 = arith.constant 0 : index
      %22 = vector.load %arg5[%c0_16, %c0_17] : memref<8x128xf32, #tpu.memory_space<vmem>>, vector<8x128xf32>
      tpu.vector_store %arg5[%c0_16, %c0_17], %21 {strides = array<i32>} : memref<8x128xf32, #tpu.memory_space<vmem>>, vector<8x128xf32>,
      %cst_18 = arith.constant 0.000000e+00 : f32
      %23 = vector.broadcast %cst_18 : f32 to vector<8x128xf32>
      %c0_19 = arith.constant 0 : index
      %c0_20 = arith.constant 0 : index
      %24 = vector.load %arg6[%c0_19, %c0_20] : memref<8x128xf32, #tpu.memory_space<vmem>>, vector<8x128xf32>
      tpu.vector_store %arg6[%c0_19, %c0_20], %23 {strides = array<i32>} : memref<8x128xf32, #tpu.memory_space<vmem>>, vector<8x128xf32>,
    } else {
    }
    %c0 = arith.constant 0 : index
    %c0_1 = arith.constant 0 : index
    %3 = vector.load %arg3[%c0, %c0_1] : memref<32x128xf32, #tpu.memory_space<vmem>>, vector<32x128xf32>
    %c0_2 = arith.constant 0 : index
    %c0_3 = arith.constant 0 : index
    %4 = vector.load %arg2[%c0_2, %c0_3] : memref<32x128xf32, #tpu.memory_space<vmem>>, vector<32x128xf32>
    %5 = arith.subf %3, %4 : vector<32x128xf32>
    %6 = arith.mulf %5, %5 : vector<32x128xf32>
    %7 = vector.shape_cast %6 : vector<32x128xf32> to vector<4x8x128xf32>
    %cst = arith.constant dense<0.000000e+00> : vector<8x128xf32>
    %8 = vector.multi_reduction <add>, %7, %cst [0] : vector<4x8x128xf32> to vector<8x128xf32>
    %9 = arith.mulf %3, %3 : vector<32x128xf32>
    %10 = vector.shape_cast %9 : vector<32x128xf32> to vector<4x8x128xf32>
    %cst_4 = arith.constant dense<0.000000e+00> : vector<8x128xf32>
    %11 = vector.multi_reduction <add>, %10, %cst_4 [0] : vector<4x8x128xf32> to vector<8x128xf32>
    %c0_5 = arith.constant 0 : index
    %c0_6 = arith.constant 0 : index
    %12 = vector.load %arg5[%c0_5, %c0_6] : memref<8x128xf32, #tpu.memory_space<vmem>>, vector<8x128xf32>
    %13 = arith.addf %12, %8 : vector<8x128xf32>
    %c0_7 = arith.constant 0 : index
    %c0_8 = arith.constant 0 : index
    %14 = vector.load %arg5[%c0_7, %c0_8] : memref<8x128xf32, #tpu.memory_space<vmem>>, vector<8x128xf32>
    tpu.vector_store %arg5[%c0_7, %c0_8], %13 {strides = array<i32>} : memref<8x128xf32, #tpu.memory_space<vmem>>, vector<8x128xf32>,
    %c0_9 = arith.constant 0 : index
    %c0_10 = arith.constant 0 : index
    %15 = vector.load %arg6[%c0_9, %c0_10] : memref<8x128xf32, #tpu.memory_space<vmem>>, vector<8x128xf32>
    %16 = arith.addf %15, %11 : vector<8x128xf32>
    %c0_11 = arith.constant 0 : index
    %c0_12 = arith.constant 0 : index
    %17 = vector.load %arg6[%c0_11, %c0_12] : memref<8x128xf32, #tpu.memory_space<vmem>>, vector<8x128xf32>
    tpu.vector_store %arg6[%c0_11, %c0_12], %16 {strides = array<i32>} : memref<8x128xf32, #tpu.memory_space<vmem>>, vector<8x128xf32>,
    %c0_i32_13 = arith.constant 0 : i32
    %18 = arith.cmpi eq, %arg1, %c0_i32_13 : i32
    %19 = arith.extui %18 : i1 to i32
    %c0_i32_14 = arith.constant 0 : i32
    %20 = arith.cmpi ne, %19, %c0_i32_14 : i32
    scf.if %20 {
      %c0_15 = arith.constant 0 : index
      %c0_16 = arith.constant 0 : index
      %21 = vector.load %arg5[%c0_15, %c0_16] : memref<8x128xf32, #tpu.memory_space<vmem>>, vector<8x128xf32>
      %22 = vector.shape_cast %21 : vector<8x128xf32> to vector<1x8x128xf32>
      %cst_17 = arith.constant dense<0.000000e+00> : vector<1xf32>
      %23 = vector.multi_reduction <add>, %22, %cst_17 [1, 2] : vector<1x8x128xf32> to vector<1xf32>
      %24 = vector.shape_cast %23 : vector<1xf32> to vector<1x1x1xf32>
      %25 = vector.extract %24[0, 0, 0] : f32 from vector<1x1x1xf32>
      %c0_18 = arith.constant 0 : index
      %c0_19 = arith.constant 0 : index
      %26 = vector.load %arg6[%c0_18, %c0_19] : memref<8x128xf32, #tpu.memory_space<vmem>>, vector<8x128xf32>
      %27 = vector.shape_cast %26 : vector<8x128xf32> to vector<1x8x128xf32>
      %cst_20 = arith.constant dense<0.000000e+00> : vector<1xf32>
      %28 = vector.multi_reduction <add>, %27, %cst_20 [1, 2] : vector<1x8x128xf32> to vector<1xf32>
      %29 = vector.shape_cast %28 : vector<1xf32> to vector<1x1x1xf32>
      %30 = vector.extract %29[0, 0, 0] : f32 from vector<1x1x1xf32>
      %cst_21 = arith.constant 0.000000e+00 : f32
      %31 = vector.broadcast %cst_21 : f32 to vector<8x128xf32>
      %32 = vector.broadcast %25 : f32 to vector<8x128xf32>
      %33 = arith.addf %31, %32 : vector<8x128xf32>
      %c0_22 = arith.constant 0 : index
      %c0_23 = arith.constant 0 : index
      %c0_24 = arith.constant 0 : index
      %c0_25 = arith.constant 0 : index
      %34 = vector.load %arg4[%c0_22, %c0_23, %c0_24, %c0_25] : memref<1x2x8x128xf32, #tpu.memory_space<vmem>>, vector<1x1x8x128xf32>
      %35 = vector.shape_cast %34 : vector<1x1x8x128xf32> to vector<8x128xf32>
      %36 = vector.shape_cast %33 : vector<8x128xf32> to vector<1x1x8x128xf32>
      tpu.vector_store %arg4[%c0_22, %c0_23, %c0_24, %c0_25], %36 {strides = array<i32>} : memref<1x2x8x128xf32, #tpu.memory_space<vmem>>, vector<1x1x8x128xf32>,
      %37 = vector.broadcast %30 : f32 to vector<8x128xf32>
      %38 = arith.addf %31, %37 : vector<8x128xf32>
      %c0_26 = arith.constant 0 : index
      %c1 = arith.constant 1 : index
      %c0_27 = arith.constant 0 : index
      %c0_28 = arith.constant 0 : index
      %39 = vector.load %arg4[%c0_26, %c1, %c0_27, %c0_28] : memref<1x2x8x128xf32, #tpu.memory_space<vmem>>, vector<1x1x8x128xf32>
      %40 = vector.shape_cast %39 : vector<1x1x8x128xf32> to vector<8x128xf32>
      %41 = vector.shape_cast %38 : vector<8x128xf32> to vector<1x1x8x128xf32>
      tpu.vector_store %arg4[%c0_26, %c1, %c0_27, %c0_28], %41 {strides = array<i32>} : memref<1x2x8x128xf32, #tpu.memory_space<vmem>>, vector<1x1x8x128xf32>,
    } else {
    }
    return
  }
  func.func @transform_0(%arg0: i32, %arg1: i32) -> (i32, i32) {
    %c0_i32 = arith.constant 0 : i32
    %c0_i32_0 = arith.constant 0 : i32
    return %arg1, %c0_i32 : i32, i32
  }
  func.func @transform_1(%arg0: i32, %arg1: i32) -> (i32, i32) {
    %c0_i32 = arith.constant 0 : i32
    %c0_i32_0 = arith.constant 0 : i32
    return %arg1, %c0_i32 : i32, i32
  }
  func.func @transform_2(%arg0: i32, %arg1: i32) -> (i32, i32, i32, i32) {
    %c0_i32 = arith.constant 0 : i32
    %c0_i32_0 = arith.constant 0 : i32
    %c0_i32_1 = arith.constant 0 : i32
    %c0_i32_2 = arith.constant 0 : i32
    return %arg0, %c0_i32, %c0_i32_0, %c0_i32_1 : i32, i32, i32, i32
  }
}

</mosaic_0001>

<llo_original>
// kernel: tpu_custom_call.1
$region0: #{tpu_custom_call.1}
  #allocation0 [shape = 'u32[]', space=smem, size = 0x4, offset = 0x4, fixed_abs, tag = 'smem constant byte address 0x4 - core index']
  #allocation1 [shape = 'u32[144,128]{1,0:T(1,128)}', space=vmem, size = 0x12000, scoped, tag = 'internal scratch']
  #allocation2 [shape = 'f32[8,128]{1,0:T(8,128)}', space=vmem, size = 0x1000, scoped, tag = 'scratch operand']
  #allocation3 [shape = 'f32[8,128]{1,0:T(8,128)}', space=vmem, size = 0x1000, scoped, tag = 'scratch operand']
  %s0 = inlined_call_operand.hbm [shape: f32[32,128], index: 0, kind: input, shape index: {}]
  %s1 = inlined_call_operand.hbm [shape: f32[32,128], index: 1, kind: input, shape index: {}]
  %s2 = inlined_call_operand.hbm [shape: f32[1,2,8,128], index: 2, kind: output, shape index: {}]
  %s3 = sld [smem:[#allocation0]]
  $region34: #{tpu_custom_call.1} parent=0
    _
  %s5 = ssub.s32 1, %s3
  %s6 = scalar_select 0, %s5, %s3
  $region1: #{tpu_custom_call.1} parent=0
    #allocation4 [shape = 'u8[16384]{0}', space=vmem, size = 0x4000, scoped, tag = 'input window, operand 0, single buffered']
    #allocation5 [shape = 's32[1]{0}', space=sflag, size = 0x4, scoped, tag = 'scoped memory for tpu_custom_call.1']
    #allocation6 [shape = 's32[1]{0}', space=sflag, size = 0x4, scoped, tag = 'scoped memory for tpu_custom_call.1']
    #allocation7 [shape = 'u8[16384]{0}', space=vmem, size = 0x4000, scoped, tag = 'input window, operand 1, single buffered']
    #allocation8 [shape = 's32[1]{0}', space=sflag, size = 0x4, scoped, tag = 'scoped memory for tpu_custom_call.1']
    #allocation9 [shape = 'u8[8192]{0}', space=vmem, size = 0x2000, scoped, tag = 'output window, operand 0, single buffered']
    %7 = vsyncpa [#allocation5], 0
    %8 = vsyncpa [#allocation8], 0
    %9 = vsyncpa [#allocation6], 0
    // Predicated region
    $region2: #{tpu_custom_call.1} parent=1 // pred_check
      _
    $region3: #{tpu_custom_call.1} parent=1 // pred_check_branch
      %11 = sbr.rel (0) target = $region5
    $region4: #{tpu_custom_call.1} parent=1 // pred_region
      %s13 = ssub.s32 512, 512
      %14 = vsyncadd [#allocation5], %s13
      %s15 = sshll.u32 [#allocation4], 4
      %s16 = int_to_ptr.vmem [resolvable:$true] %s15
      %21 = dma.hbm_to_vmem [thread:$0]  %s0, 512, %s16, [#allocation5], 128, 128, 8
    $region5: #{tpu_custom_call.1} parent=1 // pred_fallthru
      _
    // Predicated region
    $region6: #{tpu_custom_call.1} parent=1 // pred_check
      _
    $region7: #{tpu_custom_call.1} parent=1 // pred_check_branch
      %23 = sbr.rel (0) target = $region9
    $region8: #{tpu_custom_call.1} parent=1 // pred_region
      %s25 = ssub.s32 512, 512
      %26 = vsyncadd [#allocation8], %s25
      %s27 = sshll.u32 [#allocation7], 4
      %s28 = int_to_ptr.vmem [resolvable:$true] %s27
      %33 = dma.hbm_to_vmem [thread:$0]  %s1, 512, %s28, [#allocation8], 128, 128, 8
    $region9: #{tpu_custom_call.1} parent=1 // pred_fallthru
      _
    // Predicated region
    $region10: #{tpu_custom_call.1} parent=1 // pred_check
      _
    $region11: #{tpu_custom_call.1} parent=1 // pred_check_branch
      %35 = sbr.rel (0) target = $region13
    $region12: #{tpu_custom_call.1} parent=1 // pred_region
      %36 = dma.done [#allocation5], 512
    $region13: #{tpu_custom_call.1} parent=1 // pred_fallthru
      _
    // Predicated region
    $region14: #{tpu_custom_call.1} parent=1 // pred_check
      _
    $region15: #{tpu_custom_call.1} parent=1 // pred_check_branch
      %38 = sbr.rel (0) target = $region17
    $region16: #{tpu_custom_call.1} parent=1 // pred_region
      %39 = dma.done [#allocation8], 512
    $region17: #{tpu_custom_call.1} parent=1 // pred_fallthru
      _
    %p40 = scmp.eq.s32.totalorder 0, 0
    // Predicated region
    $region18: #{tpu_custom_call.1} parent=1 // pred_check
      %p41 = pneg %p40
    $region19: #{tpu_custom_call.1} parent=1 // pred_check_branch
      %43 = sbr.rel (%p41) target = $region21
    $region20: #{tpu_custom_call.1} parent=1 // pred_region
      %44 = vst [vmem:[#allocation2] sm:$0xff] 0.0
      %45 = vst [vmem:[#allocation3] sm:$0xff] 0.0
    $region21: #{tpu_custom_call.1} parent=1 // pred_fallthru
      _
    %v46 = vld [vmem:[#allocation7] sm:$0xff]
    %v47 = vld [vmem:[#allocation7 + $0x8] sm:$0xff]
    %v48 = vld [vmem:[#allocation7 + $0x10] sm:$0xff]
    %v49 = vld [vmem:[#allocation7 + $0x18] sm:$0xff]
    %v50 = vld [vmem:[#allocation4] sm:$0xff]
    %v51 = vld [vmem:[#allocation4 + $0x8] sm:$0xff]
    %v52 = vld [vmem:[#allocation4 + $0x10] sm:$0xff]
    %v53 = vld [vmem:[#allocation4 + $0x18] sm:$0xff]
    %v54 = vsub.f32 %v46, %v50
    %v55 = vsub.f32 %v47, %v51
    %v56 = vsub.f32 %v48, %v52
    %v57 = vsub.f32 %v49, %v53
    %v58 = vmul.f32 %v54, %v54
    %v59 = vmul.f32 %v55, %v55
    %v60 = vmul.f32 %v56, %v56
    %v61 = vmul.f32 %v57, %v57
    %v62 = vadd.f32 %v58, %v59
    %v63 = vadd.f32 %v62, %v60
    %v64 = vadd.f32 %v63, %v61
    %v65 = vmul.f32 %v46, %v46
    %v66 = vmul.f32 %v47, %v47
    %v67 = vmul.f32 %v48, %v48
    %v68 = vmul.f32 %v49, %v49
    %v69 = vadd.f32 %v65, %v66
    %v70 = vadd.f32 %v69, %v67
    %v71 = vadd.f32 %v70, %v68
    %v72 = vld [vmem:[#allocation2] sm:$0xff]
    %v73 = vadd.f32 %v72, %v64
    %74 = vst [vmem:[#allocation2] sm:$0xff] %v73
    %v75 = vld [vmem:[#allocation3] sm:$0xff]
    %v76 = vadd.f32 %v75, %v71
    %77 = vst [vmem:[#allocation3] sm:$0xff] %v76
    // Predicated region
    $region22: #{tpu_custom_call.1} parent=1 // pred_check
      %p78 = pneg %p40
    $region23: #{tpu_custom_call.1} parent=1 // pred_check_branch
      %80 = sbr.rel (%p78) target = $region25
    $region24: #{tpu_custom_call.1} parent=1 // pred_region
      %v81 = vld [vmem:[#allocation2] sm:$0xff]
      %82 = vadd.xlane.f32.xlu0 %v81
      %v83 = vpop.xlane.xlu0 %82
      %v84 = vrot.slane %v83, 4
      %v85 = vadd.f32 %v83, %v84
      %v86 = vrot.slane %v85, 2
      %v87 = vadd.f32 %v85, %v86
      %v88 = vrot.slane %v87, 1
      %v89 = vadd.f32 %v87, %v88
      %s90 = vtos %v89
      %v91 = vld [vmem:[#allocation3] sm:$0xff]
      %92 = vadd.xlane.f32.xlu0 %v91
      %v93 = vpop.xlane.xlu0 %92
      %v94 = vrot.slane %v93, 4
      %v95 = vadd.f32 %v93, %v94
      %v96 = vrot.slane %v95, 2
      %v97 = vadd.f32 %v95, %v96
      %v98 = vrot.slane %v97, 1
      %v99 = vadd.f32 %v97, %v98
      %s100 = vtos %v99
      %v101 = vstv %s90
      %v102 = vadd.f32 %v101, 0.0
      %103 = vst [vmem:[#allocation9] sm:$0xff] %v102
      %v104 = vstv %s100
      %v105 = vadd.f32 %v104, 0.0
      %s106 = scalar_lea.vmem [#allocation9], 8
      %107 = vst [vmem:[%s106] sm:$0xff] %v105
    $region25: #{tpu_custom_call.1} parent=1 // pred_fallthru
      _
    // Predicated region
    $region26: #{tpu_custom_call.1} parent=1 // pred_check
      _
    $region27: #{tpu_custom_call.1} parent=1 // pred_check_branch
      %109 = sbr.rel (0) target = $region29
    $region28: #{tpu_custom_call.1} parent=1 // pred_region
      %s111 = ssub.s32 256, 256
      %112 = vsyncadd [#allocation6], %s111
      %s113 = sshll.u32 [#allocation9], 4
      %s114 = int_to_ptr.vmem [resolvable:$true] %s113
      %119 = dma.vmem_to_hbm [thread:$0]  %s114, 256, %s2, [#allocation6], 128, 128, 8
    $region29: #{tpu_custom_call.1} parent=1 // pred_fallthru
      _
    // Predicated region
    $region30: #{tpu_custom_call.1} parent=1 // pred_check
      _
    $region31: #{tpu_custom_call.1} parent=1 // pred_check_branch
      %121 = sbr.rel (0) target = $region33
    $region32: #{tpu_custom_call.1} parent=1 // pred_region
      %122 = dma.done [#allocation6], 256
    $region33: #{tpu_custom_call.1} parent=1 // pred_fallthru
      _
    %123 = vsyncpa [#allocation5], 1
    %124 = vsyncpa [#allocation8], 1
    %125 = vsyncpa [#allocation6], 1

</llo_original>
